<compile_context>
chip_gen: v6e
topology: v6e:2x2x1
jax: 0.10.0
libtpu: 0.0.40
codegen_flags: <defaults>
</compile_context>

<pallas_src>
import functools

import jax
import jax.numpy as jnp
import numpy as np
from jax import lax
from jax.experimental import pallas as pl
from jax.experimental.pallas import tpu as pltpu

_EPS = 1e-6


def _edge_feature(name, d, d2):
    if name == "dist":
        return d
    if name == "dist_sq":
        return d2
    if name == "gaussian":
        return jnp.exp(-d2)
    raise ValueError(f"unknown edge operator: {name}")


def _triplet_feature(name, c):
    if name == "cos":
        return c
    if name == "cos_sq":
        return c * c
    raise ValueError(f"unknown triplet operator: {name}")


# ---------------------------------------------------------------------------
# kernels
# ---------------------------------------------------------------------------

def _edge_kernel(x_ref, edges_ref, *, edge_ops, normalize):
    """One batch element per grid step.  x_ref: (1,N,D)  edges_ref: (1,E,N,N)."""
    x = x_ref[0]                                                     # [N, D]
    gram = jnp.dot(x, x.T, preferred_element_type=jnp.float32)       # [N, N]
    sq = jnp.sum(x * x, axis=-1, keepdims=True)                      # [N, 1]
    d2 = jnp.maximum(sq + sq.T - 2.0 * gram, 0.0)
    # self-distance is exactly zero (robust to matmul rounding)
    eye = (lax.broadcasted_iota(jnp.int32, d2.shape, 0)
           == lax.broadcasted_iota(jnp.int32, d2.shape, 1))
    d2 = jnp.where(eye, 0.0, d2)
    d = jnp.sqrt(d2)
    # per-operator slice writes (no jnp.stack temporary / VMEM->VMEM copy)
    for e, name in enumerate(edge_ops):
        f = _edge_feature(name, d, d2)
        if normalize:
            # one reciprocal per row, then an O(N^2) multiply (no O(N^2) divide)
            f = f * (1.0 / (jnp.sum(f, axis=-1, keepdims=True) + _EPS))
        edges_ref[0, e] = f.astype(edges_ref.dtype)


def _triplet_kernel(x_ref, xi_ref, trip_ref, *, triplet_ops, normalize, ti):
    """Grid = (batch, anchor-tile).

    x_ref   : (1, N, D)   all points of this batch element (resident over i)
    xi_ref  : (1, TI, D)  anchor-point rows i0 : i0+TI
    trip_ref: (1, T, TI, N, N)
    """
    x = x_ref[0]                                                     # [N, D]
    xi = xi_ref[0]                                                   # [TI, D]
    n = x.shape[0]
    i0 = pl.program_id(1) * ti

    # Gram matrix: recomputed per tile (O(N^2*D) MXU flops, negligible vs. the
    # O(TI*N^2) writeback) so both grid axes stay "parallel".
    gram = jnp.dot(x, x.T, preferred_element_type=jnp.float32)       # [N, N]
    gram_i = jnp.dot(xi, x.T, preferred_element_type=jnp.float32)    # [TI, N]
    sq = jnp.sum(x * x, axis=-1, keepdims=True)                      # [N, 1]
    sq_i = jnp.sum(xi * xi, axis=-1, keepdims=True)                  # [TI, 1]

    # dot_ijk = (x_j - x_i) . (x_k - x_i)
    #         = gram[j,k] - gram_i[j] - gram_i[k] + |x_i|^2
    #         = gram[j,k] - h_i[j]   - h_i[k]     with h_i = gram_i - 0.5|x_i|^2
    h_i = gram_i - 0.5 * sq_i                                        # [TI, N]

    if normalize:
        # Reciprocal distances on the [TI, N] plane, with the degenerate-
        # triplet mask folded in: rinv = 0 on the diagonal (j == i), so any
        # triplet touching a zero-length edge is exactly 0 without an extra
        # O(TI*N^2) select on the N^3 block.
        d_i = jnp.sqrt(jnp.maximum(sq_i + sq.T - 2.0 * gram_i, 0.0))  # [TI, N]
        col = lax.broadcasted_iota(jnp.int32, (ti, n), 1)
        row = i0 + lax.broadcasted_iota(jnp.int32, (ti, n), 0)
        rinv_i = jnp.where(col == row, 0.0, 1.0 / (d_i + _EPS))       # [TI, N]
        # per element of the [TI,N,N] block: 2 adds + 2 muls (VPU-minimal)
        c = ((gram[None, :, :] - h_i[:, :, None] - h_i[:, None, :])
             * rinv_i[:, :, None] * rinv_i[:, None, :])
    else:
        c = gram[None, :, :] - h_i[:, :, None] - h_i[:, None, :]

    for t, name in enumerate(triplet_ops):
        trip_ref[0, t] = _triplet_feature(name, c).astype(trip_ref.dtype)


# ---------------------------------------------------------------------------
# wrapper
# ---------------------------------------------------------------------------

def _pick_anchor_tile(n_points, n_trip_ops, out_itemsize,
                      budget_bytes=8 * 1024 * 1024):
    """Largest anchor tile TI (divisor of N, sublane-aligned) whose per-step
    VMEM footprint (double-buffered output block + ~5 f32 temporaries of size
    TI*N*N) stays under `budget_bytes` — safe under every generation's default
    scoped-VMEM limit (v5e 16 MiB, v6e/v7x 32 MiB) and v7x's 64 MiB physical."""
    per_row = (2 * max(n_trip_ops, 1) * out_itemsize + 5 * 4) * n_points * n_points
    legal = [c for c in range(1, n_points + 1)
             if n_points % c == 0 and (c == n_points or c % 8 == 0)]
    fitting = [c for c in legal if c * per_row <= budget_bytes]
    return max(fitting) if fitting else min(legal)


def operator_forward(geometry, operators_edges, operators_triplets,
                     normalize=True, out_dtype=jnp.float32, anchor_tile=None):
    """geometry [B,N,D] -> (edges [B,E,N,N], triplets [B,T,N,N,N])."""
    B, N, D = geometry.shape
    E = len(operators_edges)
    T = len(operators_triplets)
    x = geometry.astype(jnp.float32)

    # ---- edges: grid over batch only ----
    if E == 0:
        edges = jnp.zeros((B, 0, N, N), out_dtype)
    else:
        edges = pl.pallas_call(
            functools.partial(_edge_kernel, edge_ops=tuple(operators_edges),
                              normalize=normalize),
            out_shape=jax.ShapeDtypeStruct((B, E, N, N), out_dtype),
            grid=(B,),
            in_specs=[pl.BlockSpec((1, N, D), lambda b: (b, 0, 0))],
            out_specs=pl.BlockSpec((1, E, N, N), lambda b: (b, 0, 0, 0)),
            compiler_params=pltpu.CompilerParams(
                dimension_semantics=("parallel",)),
        )(x)

    # ---- triplets: grid over (batch, anchor-tile) ----
    if T == 0:
        triplets = jnp.zeros((B, 0, N, N, N), out_dtype)
    else:
        ti = anchor_tile or _pick_anchor_tile(N, T, jnp.dtype(out_dtype).itemsize)
        assert N % ti == 0, "anchor tile must divide N"
        triplets = pl.pallas_call(
            functools.partial(_triplet_kernel,
                              triplet_ops=tuple(operators_triplets),
                              normalize=normalize, ti=ti),
            out_shape=jax.ShapeDtypeStruct((B, T, N, N, N), out_dtype),
            grid=(B, N // ti),
            in_specs=[
                pl.BlockSpec((1, N, D), lambda b, i: (b, 0, 0)),    # all points
                pl.BlockSpec((1, ti, D), lambda b, i: (b, i, 0)),   # anchor rows
            ],
            out_specs=pl.BlockSpec((1, T, ti, N, N),
                                   lambda b, i: (b, 0, i, 0, 0)),
            compiler_params=pltpu.CompilerParams(
                dimension_semantics=("parallel", "parallel")),
        )(x, x)

    return edges, triplets


class OperatorPallas:
    """Pallas analogue of the (abstract) torch `Operator` base class."""

    def __init__(self, operators_edges, operators_triplets, normalize=True):
        self.operators_edges = list(operators_edges)
        self.operators_triplets = list(operators_triplets)
        self.normalize = normalize

    @property
    def edges_dim(self):
        return len(self.operators_edges)

    @property
    def triplets_dim(self):
        return len(self.operators_triplets)

    def __call__(self, geometry):
        # TODO(synk): torch base-class forward() raises NotImplementedError;
        # this is a concrete geometric instantiation of the operator contract.
        return operator_forward(geometry, self.operators_edges,
                                self.operators_triplets, self.normalize)


# ---------------------------------------------------------------------------
# pure-JAX reference
# ---------------------------------------------------------------------------

def _reference_forward(x, edge_ops, triplet_ops, normalize=True):
    x = x.astype(jnp.float32)
    B, N, D = x.shape
    gram = jnp.einsum("bnd,bmd->bnm", x, x)
    sq = jnp.sum(x * x, axis=-1, keepdims=True)                      # [B,N,1]
    d2 = jnp.maximum(sq + jnp.swapaxes(sq, -1, -2) - 2.0 * gram, 0.0)
    eye = jnp.eye(N, dtype=bool)
    d2 = jnp.where(eye[None], 0.0, d2)
    d = jnp.sqrt(d2)

    efs = []
    for name in edge_ops:
        f = _edge_feature(name, d, d2)
        if normalize:
            f = f / (jnp.sum(f, axis=-1, keepdims=True) + _EPS)
        efs.append(f)
    edges = (jnp.stack(efs, axis=1) if efs
             else jnp.zeros((B, 0, N, N), jnp.float32))

    dot_ijk = (gram[:, None, :, :] - gram[:, :, :, None]
               - gram[:, :, None, :] + sq[:, :, :, None])            # [B,N,N,N]
    if normalize:
        rinv = 1.0 / (d + _EPS)
        c = dot_ijk * rinv[:, :, :, None] * rinv[:, :, None, :]
        idx = jnp.arange(N)
        valid = ((idx[None, :, None] != idx[:, None, None])
                 & (idx[None, None, :] != idx[:, None, None]))       # [N,N,N]
        c = jnp.where(valid[None], c, 0.0)
    else:
        c = dot_ijk
    trips = (jnp.stack([_triplet_feature(n, c) for n in triplet_ops], axis=1)
             if triplet_ops else jnp.zeros((B, 0, N, N, N), jnp.float32))
    return edges, trips


if __name__ == "__main__":
    key = jax.random.PRNGKey(0)
    B, N, D = 2, 8, 3                                     # batch, points, dim
    operators_edges = ["dist", "dist_sq", "gaussian"]     # edges_dim = 3
    operators_triplets = ["cos", "cos_sq"]                # triplets_dim = 2
    normalize = True

    geometry = jax.random.normal(key, (B, N, D), dtype=jnp.float32)

    op = OperatorPallas(operators_edges, operators_triplets, normalize)
    edges, triplets = op(geometry)
    jax.block_until_ready((edges, triplets))

    ref_edges, ref_trips = _reference_forward(
        geometry, operators_edges, operators_triplets, normalize)
    np.testing.assert_allclose(np.asarray(edges), np.asarray(ref_edges),
                               rtol=1e-4, atol=1e-4)
    np.testing.assert_allclose(np.asarray(triplets), np.asarray(ref_trips),
                               rtol=1e-4, atol=1e-4)

    assert edges.shape == (B, op.edges_dim, N, N)
    assert triplets.shape == (B, op.triplets_dim, N, N, N)
    print("KERNEL_OK")
</pallas_src>

<mosaic_0001>
module attributes {stable_mosaic.version = 11 : i64} {
  func.func @_edge_kernel(%arg0: i32, %arg1: memref<1x8x3xf32, #tpu.memory_space<vmem>>, %arg2: memref<1x3x8x8xf32, #tpu.memory_space<vmem>>) attributes {dimension_semantics = [#tpu.dimension_semantics<parallel>], iteration_bounds = array<i64: 2>, scalar_prefetch = 0 : i64, scratch_operands = 0 : i64, tpu.core_type = #tpu.core_type<tc>, window_params = [{transform_indices = @transform_0, window_bounds = array<i64: 1, 8, 3>}, {transform_indices = @transform_1, window_bounds = array<i64: 1, 3, 8, 8>}]} {
    %c0 = arith.constant 0 : index
    %c0_0 = arith.constant 0 : index
    %c0_1 = arith.constant 0 : index
    %0 = vector.load %arg1[%c0, %c0_0, %c0_1] : memref<1x8x3xf32, #tpu.memory_space<vmem>>, vector<1x8x3xf32>
    %1 = vector.shape_cast %0 : vector<1x8x3xf32> to vector<8x3xf32>
    %2 = tpu.transpose %1, [1, 0] : vector<8x3xf32> -> vector<3x8xf32>
    %cst = arith.constant dense<0.000000e+00> : vector<8x8xf32>
    %3 = tpu.matmul %1, %2, %cst {dimension_numbers = #tpu.dot_dimension_numbers<[1], [0], [0], [1], [0, 0, 1, 1], [], []>} : vector<8x3xf32>, vector<3x8xf32>, vector<8x8xf32> -> vector<8x8xf32>
    %4 = arith.mulf %1, %1 : vector<8x3xf32>
    %cst_2 = arith.constant dense<0.000000e+00> : vector<8xf32>
    %5 = vector.multi_reduction <add>, %4, %cst_2 [1] : vector<8x3xf32> to vector<8xf32>
    %6 = vector.shape_cast %5 : vector<8xf32> to vector<8x1xf32>
    %7 = tpu.transpose %6, [1, 0] : vector<8x1xf32> -> vector<1x8xf32>
    %8 = vector.broadcast %6 : vector<8x1xf32> to vector<8x8xf32>
    %9 = vector.broadcast %7 : vector<1x8xf32> to vector<8x8xf32>
    %10 = arith.addf %8, %9 : vector<8x8xf32>
    %cst_3 = arith.constant 2.000000e+00 : f32
    %11 = vector.broadcast %cst_3 : f32 to vector<8x8xf32>
    %12 = arith.mulf %11, %3 : vector<8x8xf32>
    %13 = arith.subf %10, %12 : vector<8x8xf32>
    %cst_4 = arith.constant 0.000000e+00 : f32
    %14 = vector.broadcast %cst_4 : f32 to vector<8x8xf32>
    %15 = arith.maximumf %13, %14 : vector<8x8xf32>
    %16 = tpu.iota {dimensions = array<i32: 0>} : vector<8x8xi32>
    %17 = tpu.iota {dimensions = array<i32: 1>} : vector<8x8xi32>
    %18 = arith.cmpi eq, %16, %17 : vector<8x8xi32>
    %cst_5 = arith.constant 0.000000e+00 : f32
    %19 = vector.broadcast %cst_5 : f32 to vector<8x8xf32>
    %20 = arith.select %18, %19, %15 : vector<8x8xi1>, vector<8x8xf32>
    %21 = math.sqrt %20 : vector<8x8xf32>
    %cst_6 = arith.constant dense<0.000000e+00> : vector<8xf32>
    %22 = vector.multi_reduction <add>, %21, %cst_6 [1] : vector<8x8xf32> to vector<8xf32>
    %23 = vector.shape_cast %22 : vector<8xf32> to vector<8x1xf32>
    %cst_7 = arith.constant 9.99999997E-7 : f32
    %24 = vector.broadcast %cst_7 : f32 to vector<8x1xf32>
    %25 = arith.addf %23, %24 : vector<8x1xf32>
    %cst_8 = arith.constant 1.000000e+00 : f32
    %26 = vector.broadcast %cst_8 : f32 to vector<8x1xf32>
    %27 = arith.divf %26, %25 : vector<8x1xf32>
    %28 = vector.broadcast %27 : vector<8x1xf32> to vector<8x8xf32>
    %29 = arith.mulf %21, %28 : vector<8x8xf32>
    %c0_9 = arith.constant 0 : index
    %c0_10 = arith.constant 0 : index
    %c0_11 = arith.constant 0 : index
    %c0_12 = arith.constant 0 : index
    %30 = vector.load %arg2[%c0_9, %c0_10, %c0_11, %c0_12] : memref<1x3x8x8xf32, #tpu.memory_space<vmem>>, vector<1x1x8x8xf32>
    %31 = vector.shape_cast %30 : vector<1x1x8x8xf32> to vector<8x8xf32>
    %32 = vector.shape_cast %29 : vector<8x8xf32> to vector<1x1x8x8xf32>
    tpu.vector_store %arg2[%c0_9, %c0_10, %c0_11, %c0_12], %32 {strides = array<i32>} : memref<1x3x8x8xf32, #tpu.memory_space<vmem>>, vector<1x1x8x8xf32>,
    %cst_13 = arith.constant dense<0.000000e+00> : vector<8xf32>
    %33 = vector.multi_reduction <add>, %20, %cst_13 [1] : vector<8x8xf32> to vector<8xf32>
    %34 = vector.shape_cast %33 : vector<8xf32> to vector<8x1xf32>
    %cst_14 = arith.constant 9.99999997E-7 : f32
    %35 = vector.broadcast %cst_14 : f32 to vector<8x1xf32>
    %36 = arith.addf %34, %35 : vector<8x1xf32>
    %cst_15 = arith.constant 1.000000e+00 : f32
    %37 = vector.broadcast %cst_15 : f32 to vector<8x1xf32>
    %38 = arith.divf %37, %36 : vector<8x1xf32>
    %39 = vector.broadcast %38 : vector<8x1xf32> to vector<8x8xf32>
    %40 = arith.mulf %20, %39 : vector<8x8xf32>
    %c0_16 = arith.constant 0 : index
    %c1 = arith.constant 1 : index
    %c0_17 = arith.constant 0 : index
    %c0_18 = arith.constant 0 : index
    %41 = vector.load %arg2[%c0_16, %c1, %c0_17, %c0_18] : memref<1x3x8x8xf32, #tpu.memory_space<vmem>>, vector<1x1x8x8xf32>
    %42 = vector.shape_cast %41 : vector<1x1x8x8xf32> to vector<8x8xf32>
    %43 = vector.shape_cast %40 : vector<8x8xf32> to vector<1x1x8x8xf32>
    tpu.vector_store %arg2[%c0_16, %c1, %c0_17, %c0_18], %43 {strides = array<i32>} : memref<1x3x8x8xf32, #tpu.memory_space<vmem>>, vector<1x1x8x8xf32>,
    %cst_19 = arith.constant 0.000000e+00 : f32
    %44 = vector.broadcast %cst_19 : f32 to vector<8x8xf32>
    %45 = arith.subf %44, %20 : vector<8x8xf32>
    %46 = math.exp %45 : vector<8x8xf32>
    %cst_20 = arith.constant dense<0.000000e+00> : vector<8xf32>
    %47 = vector.multi_reduction <add>, %46, %cst_20 [1] : vector<8x8xf32> to vector<8xf32>
    %48 = vector.shape_cast %47 : vector<8xf32> to vector<8x1xf32>
    %cst_21 = arith.constant 9.99999997E-7 : f32
    %49 = vector.broadcast %cst_21 : f32 to vector<8x1xf32>
    %50 = arith.addf %48, %49 : vector<8x1xf32>
    %cst_22 = arith.constant 1.000000e+00 : f32
    %51 = vector.broadcast %cst_22 : f32 to vector<8x1xf32>
    %52 = arith.divf %51, %50 : vector<8x1xf32>
    %53 = vector.broadcast %52 : vector<8x1xf32> to vector<8x8xf32>
    %54 = arith.mulf %46, %53 : vector<8x8xf32>
    %c0_23 = arith.constant 0 : index
    %c2 = arith.constant 2 : index
    %c0_24 = arith.constant 0 : index
    %c0_25 = arith.constant 0 : index
    %55 = vector.load %arg2[%c0_23, %c2, %c0_24, %c0_25] : memref<1x3x8x8xf32, #tpu.memory_space<vmem>>, vector<1x1x8x8xf32>
    %56 = vector.shape_cast %55 : vector<1x1x8x8xf32> to vector<8x8xf32>
    %57 = vector.shape_cast %54 : vector<8x8xf32> to vector<1x1x8x8xf32>
    tpu.vector_store %arg2[%c0_23, %c2, %c0_24, %c0_25], %57 {strides = array<i32>} : memref<1x3x8x8xf32, #tpu.memory_space<vmem>>, vector<1x1x8x8xf32>,
    return
  }
  func.func @transform_0(%arg0: i32) -> (i32, i32, i32) {
    %c0_i32 = arith.constant 0 : i32
    %c0_i32_0 = arith.constant 0 : i32
    %c0_i32_1 = arith.constant 0 : i32
    return %arg0, %c0_i32, %c0_i32_0 : i32, i32, i32
  }
  func.func @transform_1(%arg0: i32) -> (i32, i32, i32, i32) {
    %c0_i32 = arith.constant 0 : i32
    %c0_i32_0 = arith.constant 0 : i32
    %c0_i32_1 = arith.constant 0 : i32
    %c0_i32_2 = arith.constant 0 : i32
    return %arg0, %c0_i32, %c0_i32_0, %c0_i32_1 : i32, i32, i32, i32
  }
}

</mosaic_0001>

<llo_original>
// kernel: tpu_custom_call.1
$region0: #{tpu_custom_call.1}
  #allocation0 [shape = 'u32[]', space=smem, size = 0x4, offset = 0x4, fixed_abs, tag = 'smem constant byte address 0x4 - core index']
  #allocation1 [shape = 'u32[144,128]{1,0:T(1,128)}', space=vmem, size = 0x12000, scoped, tag = 'internal scratch']
  %s0 = inlined_call_operand.vmem [shape: f32[2,8,3], index: 0, kind: input, shape index: {}]
  %s1 = inlined_call_operand.hbm [shape: f32[2,3,8,8], index: 1, kind: output, shape index: {}]
  %s2 = sld [smem:[#allocation0]]
  $region37: #{tpu_custom_call.1} parent=0
    _
  %s4 = ssub.s32 1, %s2
  %s5 = scalar_select 0, %s4, %s2
  $region1: #{tpu_custom_call.1} parent=0
    #allocation2 [shape = 'u8[24576]{0}', space=vmem, size = 0x6000, scoped, tag = 'output window, operand 0']
    #allocation3 [shape = 's32[2]{0}', space=sflag, size = 0x8, scoped, tag = 'scoped memory for tpu_custom_call.1']
    %6 = vsyncpa [#allocation3], 0
    %s7 = scalar_lea.sflag [#allocation3], 1
    %8 = vsyncpa %s7, 0
    loop: start=0, step=1, limit=4
    $region2: #{tpu_custom_call.1} parent=1 // loop_pre_header
      _
    $region3: #{tpu_custom_call.1} parent=1 // loop_header
      %s10 = sphi 0, %s14
      %p11 = scmp.ge.s32.totalorder %s10, 4
      %s20 = sphi 0, %s22
      %s23 = sphi 0, %s20
      %s24 = sphi 0, %s23
      %s40 = sphi 0, %s24
      %s46 = sphi 0, %s48
      %s49 = sphi 0, %s46
      %s50 = sphi 0, %s49
      %s66 = sphi 0, %s50
    $region4: #{tpu_custom_call.1} parent=1 // loop_header_branch
      %13 = sbr.rel (%p11) target = $region8
    $region5: #{tpu_custom_call.1} parent=1 // loop_body
      %s15 = ssub.s32 %s10, 1
      %s16 = ssub.s32 %s10, 2
      %s17 = sadd.s32 %s10, 1
      %s18 = ssub.s32 %s10, %s17
      %p19 = scmp.eq.s32.totalorder %s18, 0
      %s21 = sadd.s32 %s20, 1
      %s22 = scalar_select %p19, %s20, %s21
      %p25 = pneg %p19
      %p26 = scmp.eq.s32.totalorder %s10, 1
      %p27 = por %p25, %p26
      %p28 = scmp.ne.s32.totalorder %s20, %s23
      %p29 = scmp.eq.s32.totalorder %s10, 0
      %p30 = por %p28, %p29
      %p31 = scmp.ne.s32.totalorder %s20, %s23
      %p32 = scmp.eq.s32.totalorder %s15, 1
      %p33 = por %p31, %p32
      %p34 = scmp.ne.s32.totalorder %s23, %s24
      %p35 = scmp.eq.s32.totalorder %s15, 0
      %p36 = por %p34, %p35
      %p37 = scmp.ne.s32.totalorder %s23, %s24
      %p38 = scmp.eq.s32.totalorder %s16, 1
      %p39 = por %p37, %p38
      %p41 = scmp.ne.s32.totalorder %s24, %s40
      %p42 = scmp.eq.s32.totalorder %s16, 0
      %p43 = por %p41, %p42
      %s44 = ssub.s32 %s10, %s17
      %p45 = scmp.eq.s32.totalorder %s44, 0
      %s47 = sadd.s32 %s46, 1
      %s48 = scalar_select %p45, %s46, %s47
      %p51 = pneg %p45
      %p52 = scmp.eq.s32.totalorder %s10, 1
      %p53 = por %p51, %p52
      %p54 = scmp.ne.s32.totalorder %s46, %s49
      %p55 = scmp.eq.s32.totalorder %s10, 0
      %p56 = por %p54, %p55
      %p57 = scmp.ne.s32.totalorder %s46, %s49
      %p58 = scmp.eq.s32.totalorder %s15, 1
      %p59 = por %p57, %p58
      %p60 = scmp.ne.s32.totalorder %s49, %s50
      %p61 = scmp.eq.s32.totalorder %s15, 0
      %p62 = por %p60, %p61
      %p63 = scmp.ne.s32.totalorder %s49, %s50
      %p64 = scmp.eq.s32.totalorder %s16, 1
      %p65 = por %p63, %p64
      %p67 = scmp.ne.s32.totalorder %s50, %s66
      %p68 = scmp.eq.s32.totalorder %s16, 0
      %p69 = por %p67, %p68
      %p70 = scmp.le.s32.totalorder 1, %s10
      %p71 = scmp.lt.s32.totalorder %s10, 3
      %p72 = pnand %p70, %p71
      %p73 = pneg %p72
      // Predicated region
      $region9: #{tpu_custom_call.1} parent=5 // pred_check
        _
      $region10: #{tpu_custom_call.1} parent=5 // pred_check_branch
        %75 = sbr.rel (%p72) target = $region12
      $region11: #{tpu_custom_call.1} parent=5 // pred_region
        %s76 = ssub.s32 %s10, 1
      $region12: #{tpu_custom_call.1} parent=5 // pred_fallthru
        _
      %p77 = scmp.lt.s32.totalorder %s10, 2
      // Predicated region
      $region13: #{tpu_custom_call.1} parent=5 // pred_check
        %p78 = pneg %p77
      $region14: #{tpu_custom_call.1} parent=5 // pred_check_branch
        %80 = sbr.rel (%p78) target = $region16
      $region15: #{tpu_custom_call.1} parent=5 // pred_region
        // Predicated region
        $region17: #{tpu_custom_call.1} parent=15 // pred_check
          %p81 = pneg %p30
        $region18: #{tpu_custom_call.1} parent=15 // pred_check_branch
          %83 = sbr.rel (%p81) target = $region20
        $region19: #{tpu_custom_call.1} parent=15 // pred_region
          %p84 = scmp.lt.s32.totalorder %s10, 1
          %s85 = scalar_select %p84, %s10, 1
          %s86 = smul.addr %s85, 8
          %s87 = scalar_lea.vmem %s0, %s86
        $region20: #{tpu_custom_call.1} parent=15 // pred_fallthru
          _
      $region16: #{tpu_custom_call.1} parent=5 // pred_fallthru
        _
      %p88 = scmp.le.s32.totalorder 1, %s10
      %p89 = scmp.lt.s32.totalorder %s10, 3
      %p90 = pnand %p88, %p89
      %p91 = pneg %p90
      // Predicated region
      $region21: #{tpu_custom_call.1} parent=5 // pred_check
        _
      $region22: #{tpu_custom_call.1} parent=5 // pred_check_branch
        %93 = sbr.rel (%p90) target = $region24
      $region23: #{tpu_custom_call.1} parent=5 // pred_region
        %s94 = ssub.s32 %s10, 1
        %p95 = scmp.lt.s32.totalorder %s15, 1
        %s96 = scalar_select %p95, %s15, 1
        %s97 = smul.addr %s96, 8
        %s98 = scalar_lea.vmem %s0, %s97
        %p99 = pneg %p36
        %p100 = pneg %p33
        %p101 = pneg %p62
        %p102 = pneg %p59
        %s103 = sand.u32 %s49, 1
        %s104 = scalar_lea.sflag [#allocation3], %s103
        %s105 = sand.u32 %s49, 1
        %s106 = smul.addr %s105, 24
        %s107 = scalar_lea.vmem [#allocation2], %s106
        %p108 = scmp.lt.s32.totalorder %s15, 1
        %s109 = scalar_select %p108, %s15, 1
        %s110 = smul.addr %s109, 8
        %s111 = scalar_lea.vmem %s0, %s110
        %v112 = vld [vmem:[%s111] sm:$0xff]
        %vm113 = vcmask 23552
        %v115 = vsel %vm113, %v112, 0
        %117 = vmatprep.subr.mxu0 0.0
        %118 = vmatpush1.xpose.msra.mxu0 0.0
        %119 = vmatprep.subr.mxu0 0.0
        %120 = vmatpush1.xpose.msra.mxu0 0.0
        %121 = vmatprep.subr.mxu0 0.0
        %122 = vmatpush1.xpose.msra.mxu0 0.0
        %123 = vmatprep.subr.mxu0 0.0
        %124 = vmatpush1.xpose.msra.mxu0 0.0
        %125 = vmatprep.subr.mxu0 0.0
        %126 = vmatpush1.xpose.msra.mxu0 0.0
        %127 = vmatprep.subr.mxu0 0.0
        %128 = vmatpush1.xpose.msra.mxu0 0.0
        %129 = vmatprep.subr.mxu0 0.0
        %130 = vmatpush1.xpose.msra.mxu0 0.0
        %131 = vmatprep.subr.mxu0 0.0
        %132 = vmatpush1.xpose.msra.mxu0 0.0
        %133 = vmatprep.subr.mxu0 0.0
        %134 = vmatpush1.xpose.msra.mxu0 0.0
        %135 = vmatprep.subr.mxu0 0.0
        %136 = vmatpush1.xpose.msra.mxu0 0.0
        %137 = vmatprep.subr.mxu0 0.0
        %138 = vmatpush1.xpose.msra.mxu0 0.0
        %139 = vmatprep.subr.mxu0 0.0
        %140 = vmatpush1.xpose.msra.mxu0 0.0
        %141 = vmatprep.subr.mxu0 0.0
        %142 = vmatpush1.xpose.msra.mxu0 0.0
        %143 = vmatprep.subr.mxu0 0.0
        %144 = vmatpush1.xpose.msra.mxu0 0.0
        %145 = vmatprep.subr.mxu0 0.0
        %146 = vmatpush1.xpose.msra.mxu0 0.0
        %147 = vmatprep.subr.mxu0 0.0
        %148 = vmatpush1.xpose.msra.mxu0 %v115
        %149 = vmatprep.subr.mxu0 0.0
        %150 = vmatpush2.xpose.msra.mxu0 0.0
        %151 = vmatprep.subr.mxu0 0.0
        %152 = vmatpush2.xpose.msra.mxu0 0.0
        %153 = vmatprep.subr.mxu0 0.0
        %154 = vmatpush2.xpose.msra.mxu0 0.0
        %155 = vmatprep.subr.mxu0 0.0
        %156 = vmatpush2.xpose.msra.mxu0 0.0
        %157 = vmatprep.subr.mxu0 0.0
        %158 = vmatpush2.xpose.msra.mxu0 0.0
        %159 = vmatprep.subr.mxu0 0.0
        %160 = vmatpush2.xpose.msra.mxu0 0.0
        %161 = vmatprep.subr.mxu0 0.0
        %162 = vmatpush2.xpose.msra.mxu0 0.0
        %163 = vmatprep.subr.mxu0 0.0
        %164 = vmatpush2.xpose.msra.mxu0 0.0
        %165 = vmatprep.subr.mxu0 0.0
        %166 = vmatpush2.xpose.msra.mxu0 0.0
        %167 = vmatprep.subr.mxu0 0.0
        %168 = vmatpush2.xpose.msra.mxu0 0.0
        %169 = vmatprep.subr.mxu0 0.0
        %170 = vmatpush2.xpose.msra.mxu0 0.0
        %171 = vmatprep.subr.mxu0 0.0
        %172 = vmatpush2.xpose.msra.mxu0 0.0
        %173 = vmatprep.subr.mxu0 0.0
        %174 = vmatpush2.xpose.msra.mxu0 0.0
        %175 = vmatprep.subr.mxu0 0.0
        %176 = vmatpush2.xpose.msra.mxu0 0.0
        %177 = vmatprep.subr.mxu0 0.0
        %178 = vmatpush2.xpose.msra.mxu0 0.0
        %179 = vmatprep.subr.mxu0 0.0
        %180 = vmatpush2.xpose.msra.mxu0 0.0
        %181 = vmatprep.mubr.f32.mxu0 0.0
        %182 = vmatmul.mubr.f32.gmra.mxu0 %v115
        %v183 = vpop.f32.mrf.mxu0
        %v184 = vadd.f32 0.0, %v183
        %v185 = vpop.f32.mrf.mxu0
        %186 = vdwg.mxu0
        %v187 = vmul.f32 %v112, %v112
        %v188 = vsel %vm113, %v187, 0.0
        %189 = vadd.xlane.f32.xlu0 %v188
        %v190 = vpop.xlane.xlu0 %189
        %191 = vxpose.xlu0.b32.start [1/16] %v190, 128
        %192 = vxpose.xlu0.b32.cont [2/16] 0.0, 128
        %193 = vxpose.xlu0.b32.cont [3/16] 0.0, 128
        %194 = vxpose.xlu0.b32.cont [4/16] 0.0, 128
        %195 = vxpose.xlu0.b32.cont [5/16] 0.0, 128
        %196 = vxpose.xlu0.b32.cont [6/16] 0.0, 128
        %197 = vxpose.xlu0.b32.cont [7/16] 0.0, 128
        %198 = vxpose.xlu0.b32.cont [8/16] 0.0, 128
        %199 = vxpose.xlu0.b32.cont [9/16] 0.0, 128
        %200 = vxpose.xlu0.b32.cont [10/16] 0.0, 128
        %201 = vxpose.xlu0.b32.cont [11/16] 0.0, 128
        %202 = vxpose.xlu0.b32.cont [12/16] 0.0, 128
        %203 = vxpose.xlu0.b32.cont [13/16] 0.0, 128
        %204 = vxpose.xlu0.b32.cont [14/16] 0.0, 128
        %205 = vxpose.xlu0.b32.cont [15/16] 0.0, 128
        %206 = vxpose.xlu0.b32.end [16/16] 0.0, 128
        %v207 = vpop.trf.xlu0
        %v208 = vpop.trf.xlu0
        %v209 = vpop.trf.xlu0
        %v210 = vpop.trf.xlu0
        %v211 = vpop.trf.xlu0
        %v212 = vpop.trf.xlu0
        %v213 = vpop.trf.xlu0
        %v214 = vpop.trf.xlu0
        %v215 = vpop.trf.xlu0
        %v216 = vpop.trf.xlu0
        %v217 = vpop.trf.xlu0
        %v218 = vpop.trf.xlu0
        %v219 = vpop.trf.xlu0
        %v220 = vpop.trf.xlu0
        %v221 = vpop.trf.xlu0
        %v222 = vpop.trf.xlu0
        %v223 = vlaneseq
        %v224 = vshrl.u32 %v223, 7
        %v225 = vsub.s32 0, %v224
        %v226 = vrot.slane %v207, %v225
        %v227 = vadd.f32 %v190, %v226
        %v228 = vmul.f32 %v184, 2.0
        %v229 = vsub.f32 %v227, %v228
        %v230 = vmax.f32 %v229, 0.0
        %v231 = vlaneseq
        %v232 = vshrl.u32 %v231, 7
        %v233 = vlaneseq
        %v234 = vand.u32 %v233, 127
        %vm235 = vcmp.eq.s32.totalorder %v232, %v234
        %v236 = vsel %vm235, 0.0, %v230
        %v237 = vrsqrt.pop %v236
        %v238 = vmul.f32 %v236, %v237
        %vm239 = vcmp.eq.f32.partialorder %v236, inf
        %v240 = vsel %vm239, %v236, %v238
        %vm241 = vcmp.eq.f32.partialorder %v236, 0.0
        %v242 = vand.u32 %v236, 2147483648
        %v243 = vsel %vm241, %v242, %v240
        %vm244 = vcmask 64512
        %v245 = vsel %vm244, %v243, 0.0
        %246 = vadd.xlane.f32.xlu0 %v245
        %v247 = vpop.xlane.xlu0 %246
        %v248 = vadd.f32 %v247, 1e-06
        %v249 = vrcp.pop %v248
        %v250 = vmul.f32 1.0, %v249
        %v251 = vmul.f32 %v243, %v250
        %252 = vst.msk [vmem:[%s107] sm:$0xff] %vm244, %v251
        %v253 = vsel %vm244, %v236, 0.0
        %254 = vadd.xlane.f32.xlu0 %v253
        %v255 = vpop.xlane.xlu0 %254
        %v256 = vadd.f32 %v255, 1e-06
        %v257 = vrcp.pop %v256
        %v258 = vmul.f32 1.0, %v257
        %v259 = vmul.f32 %v236, %v258
        %s260 = scalar_lea.vmem %s107, 8 [#allocation2]
        %261 = vst.msk [vmem:[%s260] sm:$0xff] %vm244, %v259
        %v262 = vsub.f32 0.0, %v236
        %v263 = vmul.f32 %v262, 1.442695
        %v264 = vpow.pop %v263
        %v265 = vsel %vm244, %v264, 0.0
        %266 = vadd.xlane.f32.xlu0 %v265
        %v267 = vpop.xlane.xlu0 %266
        %v268 = vadd.f32 %v267, 1e-06
        %v269 = vrcp.pop %v268
        %v270 = vmul.f32 1.0, %v269
        %v271 = vmul.f32 %v264, %v270
        %s272 = scalar_lea.vmem %s107, 16 [#allocation2]
        %273 = vst.msk [vmem:[%s272] sm:$0xff] %vm244, %v271
        %s274 = sand.u32 %s49, 1
        %s275 = scalar_lea.sflag [#allocation3], %s274
        %s276 = sand.u32 %s49, 1
        %s277 = smul.addr %s276, 24
        %s278 = scalar_lea.vmem [#allocation2], %s277
        // Predicated region
        $region25: #{tpu_custom_call.1} parent=23 // pred_check
          %p279 = pneg %p59
        $region26: #{tpu_custom_call.1} parent=23 // pred_check_branch
          %281 = sbr.rel (%p279) target = $region28
        $region27: #{tpu_custom_call.1} parent=23 // pred_region
          %s283 = ssub.s32 384, 384
          %284 = vsyncadd %s275, %s283
          %s285 = smul.addr %s15, 3
          %s286 = smul.addr %s285, 128
          %s287 = scalar_lea.hbm %s1, %s286
          %s288 = sshll.u32 %s278, 4
          %s289 = int_to_ptr.vmem [resolvable:$true] %s288
          %294 = dma.vmem_to_hbm [thread:$0]  %s289, 384, %s287, %s275, 128, 128, 8
        $region28: #{tpu_custom_call.1} parent=23 // pred_fallthru
          _
      $region24: #{tpu_custom_call.1} parent=5 // pred_fallthru
        _
      %p295 = scmp.le.s32.totalorder 2, %s10
      // Predicated region
      $region29: #{tpu_custom_call.1} parent=5 // pred_check
        %p296 = pneg %p295
      $region30: #{tpu_custom_call.1} parent=5 // pred_check_branch
        %298 = sbr.rel (%p296) target = $region32
      $region31: #{tpu_custom_call.1} parent=5 // pred_region
        %s299 = ssub.s32 %s10, 2
        // Predicated region
        $region33: #{tpu_custom_call.1} parent=31 // pred_check
          %p300 = pneg %p65
        $region34: #{tpu_custom_call.1} parent=31 // pred_check_branch
          %302 = sbr.rel (%p300) target = $region36
        $region35: #{tpu_custom_call.1} parent=31 // pred_region
          %s303 = sand.u32 %s50, 1
          %s304 = scalar_lea.sflag [#allocation3], %s303
          %s305 = sand.u32 %s50, 1
          %s306 = smul.addr %s305, 24
          %s307 = scalar_lea.vmem [#allocation2], %s306
          %308 = dma.done %s304, 384
        $region36: #{tpu_custom_call.1} parent=31 // pred_fallthru
          _
      $region32: #{tpu_custom_call.1} parent=5 // pred_fallthru
        _
    $region6: #{tpu_custom_call.1} parent=1 // loop_footer
      %s14 = sadd.s32 1, %s10
    $region7: #{tpu_custom_call.1} parent=1 // loop_footer_branch
      %9 = sbr.rel target = $region3
    $region8: #{tpu_custom_call.1} parent=1 // loop_exit
      _
    %309 = vsyncpa [#allocation3], 1
    %s310 = scalar_lea.sflag [#allocation3], 1
    %311 = vsyncpa %s310, 1

</llo_original>
